<compile_context>
chip_gen: v5e
topology: v5e:2x2
jax: 0.10.0
libtpu: 0.0.40
codegen_flags: <defaults>
</compile_context>

<pallas_src>
import jax
import jax.numpy as jnp
from jax.experimental import pallas as pl
from jax.experimental.pallas import tpu as pltpu


def _mlp_featmap_kernel(x_ref, wt_ref, b_ref, o_ref):
    # x_ref:  (Bt, K, TS)  activations, spatial axis last (lane-dense)
    # wt_ref: (N, K)       W^T, resident across grid
    # b_ref:  (N, 1)       bias, resident across grid
    # o_ref:  (Bt, N, TS)  output tile, lane-dense (TS multiple of 128 or == S)
    wt = wt_ref[...]
    bias = b_ref[...]
    # Small static loop over the batch block; each iteration is a single
    # (N, TS) matmul + bias + ReLU with an unmasked full-lane store.
    for bi in range(x_ref.shape[0]):
        y = jnp.dot(wt, x_ref[bi], preferred_element_type=jnp.float32)
        o_ref[bi] = jnp.maximum(y + bias, 0.0).astype(o_ref.dtype)


def _largest_divisor_tile(S, cap):
    """Largest multiple-of-128 divisor of S that is <= cap (requires S % 128 == 0)."""
    ts = max(128, (min(cap, S) // 128) * 128)
    while S % ts != 0:
        ts -= 128
    return ts


def mlp_featmap(x, w, b, *, tile_s=32768, target_step_bytes=4 * 1024 * 1024,
                max_batch_block=16):
    """Forward of MLPFeatMap (eval mode).

    x: (B, nf, H, NS); w: (nf, hidden); b: (hidden,).  Returns (B, hidden, H, NS).
    """
    B, NF, H, NS = x.shape
    K, N = w.shape
    assert K == NF
    S = H * NS
    itemsize = jnp.dtype(x.dtype).itemsize

    x3 = x.reshape(B, K, S)          # free, contiguous reshape
    wt = jnp.transpose(w)            # (N, K), tiny one-time op
    b2 = b.reshape(N, 1)

    # ---- spatial tile -------------------------------------------------------
    # Tile spatially only when S is a multiple of 128, and pick ts as an exact
    # divisor of S: no jnp.pad and no post-kernel slice (the N-wide output
    # dominates HBM traffic, an extra slice pass would ~double its cost).
    # Otherwise use a full-extent spatial block (satisfies the (8,128) rule).
    vmem_tile_cap = max(128, (8 * 1024 * 1024) // max((K + N) * itemsize, 1))
    if S % 128 == 0:
        cap = min(tile_s, vmem_tile_cap)
        if B == 1 and S >= 256:
            cap = min(cap, S // 2)   # keep >=2 grid steps for v7x's 2 TCs
        ts = _largest_divisor_tile(S, cap)
    else:
        ts = S
    s_tiles = S // ts

    # ---- batch block --------------------------------------------------------
    # Fold several batch elements into one grid step so each step moves a few
    # MB of HBM traffic (amortizes the ~0.35 us fixed per-step pipeline cost).
    per_batch_bytes = (K + N) * ts * itemsize
    bt = int(max(1, min(max_batch_block, B,
                        target_step_bytes // max(per_batch_bytes, 1))))
    while B % bt != 0:
        bt -= 1
    if s_tiles == 1 and (B // bt) < 2 and B >= 2:
        bt = B // 2                  # guarantee >=2 parallel grid steps
        while B % bt != 0:
            bt -= 1
    grid = (B // bt, s_tiles)

    out3 = pl.pallas_call(
        _mlp_featmap_kernel,
        out_shape=jax.ShapeDtypeStruct((B, N, S), x.dtype),
        grid_spec=pltpu.PrefetchScalarGridSpec(
            num_scalar_prefetch=0,
            grid=grid,
            in_specs=[
                # activations: (Bt, K, ts) tile, spatial axis last
                pl.BlockSpec((bt, K, ts), lambda bi, si: (bi, 0, si)),
                # W^T resident across the grid
                pl.BlockSpec((N, K), lambda bi, si: (0, 0)),
                # bias resident across the grid
                pl.BlockSpec((N, 1), lambda bi, si: (0, 0)),
            ],
            out_specs=pl.BlockSpec((bt, N, ts), lambda bi, si: (bi, 0, si)),
        ),
        compiler_params=pltpu.CompilerParams(
            dimension_semantics=("parallel", "parallel"),
        ),
    )(x3, wt, b2)

    return out3.reshape(B, N, H, NS)


def mlp_featmap_ref(x, w, b):
    """Pure-JAX reference matching the PyTorch module (eval mode)."""
    xp = jnp.transpose(x, (0, 2, 3, 1))
    y = jnp.maximum(xp @ w + b, 0.0)
    return jnp.transpose(y, (0, 3, 1, 2))


if __name__ == "__main__":
    # Small shapes consistent with the module's forward: x: (batch, in_channels, h, ns)
    batch, in_channels, h, ns = 2, 4, 16, 8
    hidden_size = 32

    key = jax.random.PRNGKey(0)
    kx, kw, kb = jax.random.split(key, 3)

    x = jax.random.normal(kx, (batch, in_channels, h, ns), dtype=jnp.float32)
    # Deterministic "Linear" parameters (math layout: (in_channels, hidden)).
    w = jax.random.normal(kw, (in_channels, hidden_size), dtype=jnp.float32) * 0.1
    b = jax.random.normal(kb, (hidden_size,), dtype=jnp.float32) * 0.1

    out = mlp_featmap(x, w, b)
    out = jax.block_until_ready(out)

    ref = mlp_featmap_ref(x, w, b)
    assert out.shape == (batch, hidden_size, h, ns), out.shape
    assert jnp.allclose(out, ref, atol=1e-5, rtol=1e-5), "mismatch vs reference"

    print("KERNEL_OK")
</pallas_src>

<mosaic_0001>
module attributes {stable_mosaic.version = 11 : i64} {
  func.func @_mlp_featmap_kernel(%arg0: i32, %arg1: i32, %arg2: memref<1x4x128xf32, #tpu.memory_space<vmem>>, %arg3: memref<32x4xf32, #tpu.memory_space<vmem>>, %arg4: memref<32x1xf32, #tpu.memory_space<vmem>>, %arg5: memref<1x32x128xf32, #tpu.memory_space<vmem>>) attributes {dimension_semantics = [#tpu.dimension_semantics<parallel>, #tpu.dimension_semantics<parallel>], iteration_bounds = array<i64: 2, 1>, scalar_prefetch = 0 : i64, scratch_operands = 0 : i64, tpu.core_type = #tpu.core_type<tc>, window_params = [{transform_indices = @transform_0, window_bounds = array<i64: 1, 4, 128>}, {pipeline_mode = #tpu.pipeline_mode<synchronous>, transform_indices = @transform_1, window_bounds = array<i64: 32, 4>}, {pipeline_mode = #tpu.pipeline_mode<synchronous>, transform_indices = @transform_2, window_bounds = array<i64: 32, 1>}, {transform_indices = @transform_3, window_bounds = array<i64: 1, 32, 128>}]} {
    %c0 = arith.constant 0 : index
    %c0_0 = arith.constant 0 : index
    %0 = vector.load %arg3[%c0, %c0_0] : memref<32x4xf32, #tpu.memory_space<vmem>>, vector<32x4xf32>
    %c0_1 = arith.constant 0 : index
    %c0_2 = arith.constant 0 : index
    %1 = vector.load %arg4[%c0_1, %c0_2] : memref<32x1xf32, #tpu.memory_space<vmem>>, vector<32x1xf32>
    %c0_3 = arith.constant 0 : index
    %c0_4 = arith.constant 0 : index
    %c0_5 = arith.constant 0 : index
    %2 = vector.load %arg2[%c0_3, %c0_4, %c0_5] : memref<1x4x128xf32, #tpu.memory_space<vmem>>, vector<1x4x128xf32>
    %3 = vector.shape_cast %2 : vector<1x4x128xf32> to vector<4x128xf32>
    %cst = arith.constant dense<0.000000e+00> : vector<32x128xf32>
    %4 = tpu.matmul %0, %3, %cst {dimension_numbers = #tpu.dot_dimension_numbers<[1], [0], [0], [1], [0, 0, 1, 1], [], []>} : vector<32x4xf32>, vector<4x128xf32>, vector<32x128xf32> -> vector<32x128xf32>
    %5 = vector.broadcast %1 : vector<32x1xf32> to vector<32x128xf32>
    %6 = arith.addf %4, %5 : vector<32x128xf32>
    %cst_6 = arith.constant 0.000000e+00 : f32
    %7 = vector.broadcast %cst_6 : f32 to vector<32x128xf32>
    %8 = arith.maximumf %6, %7 : vector<32x128xf32>
    %c0_7 = arith.constant 0 : index
    %c0_8 = arith.constant 0 : index
    %c0_9 = arith.constant 0 : index
    %9 = vector.load %arg5[%c0_7, %c0_8, %c0_9] : memref<1x32x128xf32, #tpu.memory_space<vmem>>, vector<1x32x128xf32>
    %10 = vector.shape_cast %9 : vector<1x32x128xf32> to vector<32x128xf32>
    %11 = vector.shape_cast %8 : vector<32x128xf32> to vector<1x32x128xf32>
    tpu.vector_store %arg5[%c0_7, %c0_8, %c0_9], %11 {strides = array<i32>} : memref<1x32x128xf32, #tpu.memory_space<vmem>>, vector<1x32x128xf32>,
    return
  }
  func.func @transform_0(%arg0: i32, %arg1: i32) -> (i32, i32, i32) {
    %c0_i32 = arith.constant 0 : i32
    %c0_i32_0 = arith.constant 0 : i32
    return %arg0, %c0_i32, %arg1 : i32, i32, i32
  }
  func.func @transform_1(%arg0: i32, %arg1: i32) -> (i32, i32) {
    %c0_i32 = arith.constant 0 : i32
    %c0_i32_0 = arith.constant 0 : i32
    %c0_i32_1 = arith.constant 0 : i32
    return %c0_i32, %c0_i32_0 : i32, i32
  }
  func.func @transform_2(%arg0: i32, %arg1: i32) -> (i32, i32) {
    %c0_i32 = arith.constant 0 : i32
    %c0_i32_0 = arith.constant 0 : i32
    %c0_i32_1 = arith.constant 0 : i32
    return %c0_i32, %c0_i32_0 : i32, i32
  }
  func.func @transform_3(%arg0: i32, %arg1: i32) -> (i32, i32, i32) {
    %c0_i32 = arith.constant 0 : i32
    %c0_i32_0 = arith.constant 0 : i32
    return %arg0, %c0_i32, %arg1 : i32, i32, i32
  }
}

</mosaic_0001>

<llo_original>
// kernel: tpu_custom_call.1
$region0: #{tpu_custom_call.1}
  #allocation0 [shape = 'u32[]', space=smem, size = 0x4, offset = 0x4, fixed_abs, tag = 'smem constant byte address 0x4 - core index']
  #allocation1 [shape = 'u32[72,128]{1,0:T(1,128)}', space=vmem, size = 0x9000, scoped, tag = 'internal scratch']
  %s0 = inlined_call_operand.vmem [shape: f32[2,4,128], index: 0, kind: input, shape index: {}]
  %s1 = inlined_call_operand.vmem [shape: f32[32,4], index: 1, kind: input, shape index: {}]
  %s2 = inlined_call_operand.vmem [shape: f32[32,1], index: 2, kind: input, shape index: {}]
  %s3 = inlined_call_operand.hbm [shape: f32[2,32,128], index: 3, kind: output, shape index: {}]
  %s4 = sld [smem:[#allocation0]]
  $region45: #{tpu_custom_call.1} parent=0
    _
  %s6 = ssub.s32 1, %s4
  %s7 = scalar_select 0, %s6, %s4
  $region1: #{tpu_custom_call.1} parent=0
    #allocation2 [shape = 'u8[32768]{0}', space=vmem, size = 0x8000, scoped, tag = 'output window, operand 0']
    #allocation3 [shape = 's32[2]{0}', space=sflag, size = 0x8, scoped, tag = 'scoped memory for tpu_custom_call.1']
    %8 = vsyncpa [#allocation3], 0
    %s9 = scalar_lea.sflag [#allocation3], 1
    %10 = vsyncpa %s9, 0
    loop: start=0, step=1, limit=4
    $region2: #{tpu_custom_call.1} parent=1 // loop_pre_header
      _
    $region3: #{tpu_custom_call.1} parent=1 // loop_header
      %s12 = sphi 0, %s16
      %p13 = scmp.ge.s32.totalorder %s12, 4
      %s19 = sphi 0, %s31
      %s20 = sphi 0, %s27
      %s21 = sphi 0, %s19
      %s22 = sphi 0, %s20
      %s23 = sphi 0, %s21
      %s24 = sphi 0, %s22
      %s36 = sphi 0, %s38
      %s39 = sphi 0, %s36
      %s40 = sphi 0, %s39
      %s56 = sphi 0, %s40
      %s60 = sphi 0, %s60
      %s62 = sphi 0, %s60
      %s63 = sphi 0, %s62
      %s77 = sphi 0, %s63
      %s81 = sphi 0, %s81
      %s83 = sphi 0, %s81
      %s84 = sphi 0, %s83
      %s98 = sphi 0, %s84
      %s106 = sphi 0, %s108
      %s109 = sphi 0, %s106
      %s110 = sphi 0, %s109
      %s126 = sphi 0, %s110
    $region4: #{tpu_custom_call.1} parent=1 // loop_header_branch
      %15 = sbr.rel (%p13) target = $region8
    $region5: #{tpu_custom_call.1} parent=1 // loop_body
      %s17 = ssub.s32 %s12, 1
      %s18 = ssub.s32 %s12, 2
      %s25 = sadd.s32 1, %s20
      %p26 = scmp.ge.s32.totalorder %s25, 1
      %s27 = scalar_select %p26, 0, %s25
      %s28 = sadd.s32 1, %s19
      %s29 = scalar_select %p26, %s28, %s19
      %p30 = scmp.ge.s32.totalorder %s29, 2
      %s31 = scalar_select %p30, 0, %s29
      %s32 = ssub.s32 %s19, %s31
      %s33 = ssub.s32 %s20, %s27
      %s34 = sor.u32 %s32, %s33
      %p35 = scmp.eq.s32.totalorder %s34, 0
      %s37 = sadd.s32 %s36, 1
      %s38 = scalar_select %p35, %s36, %s37
      %p41 = pneg %p35
      %p42 = scmp.eq.s32.totalorder %s12, 1
      %p43 = por %p41, %p42
      %p44 = scmp.ne.s32.totalorder %s36, %s39
      %p45 = scmp.eq.s32.totalorder %s12, 0
      %p46 = por %p44, %p45
      %p47 = scmp.ne.s32.totalorder %s36, %s39
      %p48 = scmp.eq.s32.totalorder %s17, 1
      %p49 = por %p47, %p48
      %p50 = scmp.ne.s32.totalorder %s39, %s40
      %p51 = scmp.eq.s32.totalorder %s17, 0
      %p52 = por %p50, %p51
      %p53 = scmp.ne.s32.totalorder %s39, %s40
      %p54 = scmp.eq.s32.totalorder %s18, 1
      %p55 = por %p53, %p54
      %p57 = scmp.ne.s32.totalorder %s40, %s56
      %p58 = scmp.eq.s32.totalorder %s18, 0
      %p59 = por %p57, %p58
      %s61 = sadd.s32 %s60, 1
      %p64 = scmp.eq.s32.totalorder %s12, 1
      %p65 = scmp.ne.s32.totalorder %s60, %s62
      %p66 = scmp.eq.s32.totalorder %s12, 0
      %p67 = por %p65, %p66
      %p68 = scmp.ne.s32.totalorder %s60, %s62
      %p69 = scmp.eq.s32.totalorder %s17, 1
      %p70 = por %p68, %p69
      %p71 = scmp.ne.s32.totalorder %s62, %s63
      %p72 = scmp.eq.s32.totalorder %s17, 0
      %p73 = por %p71, %p72
      %p74 = scmp.ne.s32.totalorder %s62, %s63
      %p75 = scmp.eq.s32.totalorder %s18, 1
      %p76 = por %p74, %p75
      %p78 = scmp.ne.s32.totalorder %s63, %s77
      %p79 = scmp.eq.s32.totalorder %s18, 0
      %p80 = por %p78, %p79
      %s82 = sadd.s32 %s81, 1
      %p85 = scmp.eq.s32.totalorder %s12, 1
      %p86 = scmp.ne.s32.totalorder %s81, %s83
      %p87 = scmp.eq.s32.totalorder %s12, 0
      %p88 = por %p86, %p87
      %p89 = scmp.ne.s32.totalorder %s81, %s83
      %p90 = scmp.eq.s32.totalorder %s17, 1
      %p91 = por %p89, %p90
      %p92 = scmp.ne.s32.totalorder %s83, %s84
      %p93 = scmp.eq.s32.totalorder %s17, 0
      %p94 = por %p92, %p93
      %p95 = scmp.ne.s32.totalorder %s83, %s84
      %p96 = scmp.eq.s32.totalorder %s18, 1
      %p97 = por %p95, %p96
      %p99 = scmp.ne.s32.totalorder %s84, %s98
      %p100 = scmp.eq.s32.totalorder %s18, 0
      %p101 = por %p99, %p100
      %s102 = ssub.s32 %s19, %s31
      %s103 = ssub.s32 %s20, %s27
      %s104 = sor.u32 %s102, %s103
      %p105 = scmp.eq.s32.totalorder %s104, 0
      %s107 = sadd.s32 %s106, 1
      %s108 = scalar_select %p105, %s106, %s107
      %p111 = pneg %p105
      %p112 = scmp.eq.s32.totalorder %s12, 1
      %p113 = por %p111, %p112
      %p114 = scmp.ne.s32.totalorder %s106, %s109
      %p115 = scmp.eq.s32.totalorder %s12, 0
      %p116 = por %p114, %p115
      %p117 = scmp.ne.s32.totalorder %s106, %s109
      %p118 = scmp.eq.s32.totalorder %s17, 1
      %p119 = por %p117, %p118
      %p120 = scmp.ne.s32.totalorder %s109, %s110
      %p121 = scmp.eq.s32.totalorder %s17, 0
      %p122 = por %p120, %p121
      %p123 = scmp.ne.s32.totalorder %s109, %s110
      %p124 = scmp.eq.s32.totalorder %s18, 1
      %p125 = por %p123, %p124
      %p127 = scmp.ne.s32.totalorder %s110, %s126
      %p128 = scmp.eq.s32.totalorder %s18, 0
      %p129 = por %p127, %p128
      %p130 = scmp.le.s32.totalorder 1, %s12
      %p131 = scmp.lt.s32.totalorder %s12, 3
      %p132 = pnand %p130, %p131
      %p133 = pneg %p132
      // Predicated region
      $region9: #{tpu_custom_call.1} parent=5 // pred_check
        _
      $region10: #{tpu_custom_call.1} parent=5 // pred_check_branch
        %135 = sbr.rel (%p132) target = $region12
      $region11: #{tpu_custom_call.1} parent=5 // pred_region
        %s136 = ssub.s32 %s12, 1
        // Predicated region
        $region13: #{tpu_custom_call.1} parent=11 // pred_check
          %p137 = pneg %p73
        $region14: #{tpu_custom_call.1} parent=11 // pred_check_branch
          %139 = sbr.rel (%p137) target = $region16
        $region15: #{tpu_custom_call.1} parent=11 // pred_region
          _
        $region16: #{tpu_custom_call.1} parent=11 // pred_fallthru
          _
        // Predicated region
        $region17: #{tpu_custom_call.1} parent=11 // pred_check
          %p140 = pneg %p94
        $region18: #{tpu_custom_call.1} parent=11 // pred_check_branch
          %142 = sbr.rel (%p140) target = $region20
        $region19: #{tpu_custom_call.1} parent=11 // pred_region
          _
        $region20: #{tpu_custom_call.1} parent=11 // pred_fallthru
          _
      $region12: #{tpu_custom_call.1} parent=5 // pred_fallthru
        _
      %p143 = scmp.lt.s32.totalorder %s12, 2
      // Predicated region
      $region21: #{tpu_custom_call.1} parent=5 // pred_check
        %p144 = pneg %p143
      $region22: #{tpu_custom_call.1} parent=5 // pred_check_branch
        %146 = sbr.rel (%p144) target = $region24
      $region23: #{tpu_custom_call.1} parent=5 // pred_region
        // Predicated region
        $region25: #{tpu_custom_call.1} parent=23 // pred_check
          %p147 = pneg %p46
        $region26: #{tpu_custom_call.1} parent=23 // pred_check_branch
          %149 = sbr.rel (%p147) target = $region28
        $region27: #{tpu_custom_call.1} parent=23 // pred_region
          %p150 = scmp.lt.s32.totalorder %s19, 1
          %s151 = scalar_select %p150, %s19, 1
          %p152 = scmp.lt.s32.totalorder %s20, 0
          %s153 = scalar_select %p152, %s20, 0
          %s154 = sadd.s32 %s153, %s151
          %s155 = smul.addr %s154, 4
          %s156 = scalar_lea.vmem %s0, %s155
        $region28: #{tpu_custom_call.1} parent=23 // pred_fallthru
          _
      $region24: #{tpu_custom_call.1} parent=5 // pred_fallthru
        _
      %p157 = scmp.le.s32.totalorder 1, %s12
      %p158 = scmp.lt.s32.totalorder %s12, 3
      %p159 = pnand %p157, %p158
      %p160 = pneg %p159
      // Predicated region
      $region29: #{tpu_custom_call.1} parent=5 // pred_check
        _
      $region30: #{tpu_custom_call.1} parent=5 // pred_check_branch
        %162 = sbr.rel (%p159) target = $region32
      $region31: #{tpu_custom_call.1} parent=5 // pred_region
        %s163 = ssub.s32 %s12, 1
        %p164 = scmp.lt.s32.totalorder %s21, 1
        %s165 = scalar_select %p164, %s21, 1
        %p166 = scmp.lt.s32.totalorder %s22, 0
        %s167 = scalar_select %p166, %s22, 0
        %s168 = sadd.s32 %s167, %s165
        %s169 = smul.addr %s168, 4
        %s170 = scalar_lea.vmem %s0, %s169
        %p171 = pneg %p52
        %p172 = pneg %p49
        %p173 = pneg %p73
        %p174 = pneg %p70
        %p175 = pneg %p94
        %p176 = pneg %p91
        %p177 = pneg %p122
        %p178 = pneg %p119
        %s179 = sand.u32 %s109, 1
        %s180 = scalar_lea.sflag [#allocation3], %s179
        %s181 = sand.u32 %s109, 1
        %s182 = smul.addr %s181, 32
        %s183 = scalar_lea.vmem [#allocation2], %s182
        %p184 = scmp.lt.s32.totalorder %s21, 1
        %s185 = scalar_select %p184, %s21, 1
        %p186 = scmp.lt.s32.totalorder %s22, 0
        %s187 = scalar_select %p186, %s22, 0
        %s188 = sadd.s32 %s187, %s185
        %s189 = smul.addr %s188, 4
        %s190 = scalar_lea.vmem %s0, %s189
        %v191 = vld [vmem:[%s1] sm:$0xff]
        %v192 = vld [vmem:[%s1 + $0x8] sm:$0xff]
        %v193 = vld [vmem:[%s1 + $0x10] sm:$0xff]
        %v194 = vld [vmem:[%s1 + $0x18] sm:$0xff]
        %v195 = vld [vmem:[%s2] sm:$0xff]
        %v196 = vld [vmem:[%s2 + $0x8] sm:$0xff]
        %v197 = vld [vmem:[%s2 + $0x10] sm:$0xff]
        %v198 = vld [vmem:[%s2 + $0x18] sm:$0xff]
        %v199 = vld [vmem:[%s190] sm:$0xf]
        %201 = vset.pattern.permute.xlu0 0
        %202 = vperm.xlu0 %201, %v195
        %v203 = vpop.permute.xlu0 %202
        %206 = vset.pattern.permute.xlu0 0
        %207 = vperm.xlu0 %206, %v196
        %v208 = vpop.permute.xlu0 %207
        %211 = vset.pattern.permute.xlu0 0
        %212 = vperm.xlu0 %211, %v197
        %v213 = vpop.permute.xlu0 %212
        %216 = vset.pattern.permute.xlu0 0
        %217 = vperm.xlu0 %216, %v198
        %v218 = vpop.permute.xlu0 %217
        %vm220 = vcmask 31744
        %v222 = vsel %vm220, %v191, 0
        %v225 = vsel %vm220, %v192, 0
        %v228 = vsel %vm220, %v193, 0
        %v231 = vsel %vm220, %v194, 0
        %vm233 = vcmask 1043456
        %v235 = vsel %vm233, %v199, 0
        %237 = vmatpush.msra.mxu0 0.0
        %238 = vmatpush.msra.mxu0 0.0
        %239 = vmatpush.msra.mxu0 0.0
        %240 = vmatpush.msra.mxu0 0.0
        %241 = vmatpush.msra.mxu0 0.0
        %242 = vmatpush.msra.mxu0 0.0
        %243 = vmatpush.msra.mxu0 0.0
        %244 = vmatpush.msra.mxu0 0.0
        %245 = vmatpush.msra.mxu0 0.0
        %246 = vmatpush.msra.mxu0 0.0
        %247 = vmatpush.msra.mxu0 0.0
        %248 = vmatpush.msra.mxu0 0.0
        %249 = vmatpush.msra.mxu0 0.0
        %250 = vmatpush.msra.mxu0 0.0
        %251 = vmatpush.msra.mxu0 0.0
        %252 = vmatpush.msra.mxu0 %v235
        %253 = vmatmul.f32.gmra.mxu0 %v222
        %v254 = vpop.f32.mrf.mxu0
        %v255 = vadd.f32 %v203, %v254
        %256 = vmatmul.f32.gmra.mxu0 %v225
        %v257 = vpop.f32.mrf.mxu0
        %v258 = vadd.f32 %v208, %v257
        %259 = vmatmul.f32.gmra.mxu0 %v228
        %v260 = vpop.f32.mrf.mxu0
        %v261 = vadd.f32 %v213, %v260
        %262 = vmatmul.f32.gmra.mxu0 %v231
        %v263 = vpop.f32.mrf.mxu0
        %v264 = vadd.f32 %v218, %v263
        %265 = vdwg.mxu0
        %v266 = vmax.f32 %v255, 0.0
        %v267 = vmax.f32 %v258, 0.0
        %v268 = vmax.f32 %v261, 0.0
        %v269 = vmax.f32 %v264, 0.0
        %270 = vst [vmem:[%s183] sm:$0xff] %v266
        %271 = vst [vmem:[%s183 + $0x8] sm:$0xff] %v267
        %272 = vst [vmem:[%s183 + $0x10] sm:$0xff] %v268
        %273 = vst [vmem:[%s183 + $0x18] sm:$0xff] %v269
        %s274 = sand.u32 %s109, 1
        %s275 = scalar_lea.sflag [#allocation3], %s274
        %s276 = sand.u32 %s109, 1
        %s277 = smul.addr %s276, 32
        %s278 = scalar_lea.vmem [#allocation2], %s277
        // Predicated region
        $region33: #{tpu_custom_call.1} parent=31 // pred_check
          %p279 = pneg %p119
        $region34: #{tpu_custom_call.1} parent=31 // pred_check_branch
          %281 = sbr.rel (%p279) target = $region36
        $region35: #{tpu_custom_call.1} parent=31 // pred_region
          %283 = vsyncadd %s275, 0
          %s284 = smul.addr %s21, 4
          %s285 = sadd.s32 %s22, %s284
          %s286 = smul.addr %s285, 8
          %s287 = scalar_lea.hbm %s3, %s286
          %s288 = sshll.u32 %s278, 4
          %s289 = int_to_ptr.vmem [resolvable:$true] %s288
          %s290 = sshll.u32 %s287, 4
          %s291 = int_to_ptr.hbm [resolvable:$true] %s290
          %296 = dma.vmem_to_hbm [thread:$0]  %s289, 512, %s291, %s275, 128, 128, 8
        $region36: #{tpu_custom_call.1} parent=31 // pred_fallthru
          _
      $region32: #{tpu_custom_call.1} parent=5 // pred_fallthru
        _
      %p297 = scmp.le.s32.totalorder 2, %s12
      // Predicated region
      $region37: #{tpu_custom_call.1} parent=5 // pred_check
        %p298 = pneg %p297
      $region38: #{tpu_custom_call.1} parent=5 // pred_check_branch
        %300 = sbr.rel (%p298) target = $region40
      $region39: #{tpu_custom_call.1} parent=5 // pred_region
        %s301 = ssub.s32 %s12, 2
        // Predicated region
        $region41: #{tpu_custom_call.1} parent=39 // pred_check
          %p302 = pneg %p125
        $region42: #{tpu_custom_call.1} parent=39 // pred_check_branch
          %304 = sbr.rel (%p302) target = $region44
        $region43: #{tpu_custom_call.1} parent=39 // pred_region
          %s305 = sand.u32 %s110, 1
          %s306 = scalar_lea.sflag [#allocation3], %s305
          %s307 = sand.u32 %s110, 1
          %s308 = smul.addr %s307, 32
          %s309 = scalar_lea.vmem [#allocation2], %s308
          %311 = dma.done %s306, 512
        $region44: #{tpu_custom_call.1} parent=39 // pred_fallthru
          _
      $region40: #{tpu_custom_call.1} parent=5 // pred_fallthru
        _
    $region6: #{tpu_custom_call.1} parent=1 // loop_footer
      %s16 = sadd.s32 1, %s12
    $region7: #{tpu_custom_call.1} parent=1 // loop_footer_branch
      %11 = sbr.rel target = $region3
    $region8: #{tpu_custom_call.1} parent=1 // loop_exit
      _
    %312 = vsyncpa [#allocation3], 1
    %s313 = scalar_lea.sflag [#allocation3], 1
    %314 = vsyncpa %s313, 1

</llo_original>
